<compile_context>
chip_gen: v7x
topology: tpu7x:2x2x1
jax: 0.10.0
libtpu: 0.0.40
codegen_flags: <defaults>
</compile_context>

<pallas_src>
import functools

import jax
import jax.numpy as jnp
from jax.experimental import pallas as pl
from jax.experimental.pallas import tpu as pltpu


_FEAT_CAP = 8192         # max lanes per feature block (multiple of 128)
_SLAB_BYTES = 2 << 20    # max live f32 row-chunk slab inside the kernel


def _round_down(x, m):
    return (x // m) * m


def _round_up(x, m):
    return ((x + m - 1) // m) * m


def _device_budgets():
    """Per-generation (tile_bytes, vmem_limit_bytes, want_two_batch_tiles)."""
    kind = ""
    try:
        kind = jax.devices()[0].device_kind.lower()
    except Exception:
        pass
    if "v7" in kind:        # 64 MiB VMEM, ~3.2 TB/s HBM, 2 TensorCores
        return 16 << 20, 48 << 20, True
    if "v6" in kind:        # 128 MiB VMEM, ~1.4 TB/s HBM
        return 24 << 20, 96 << 20, False
    if "v5" in kind:        # 128 MiB VMEM (16 MiB scoped default), ~0.82 TB/s
        return 12 << 20, 64 << 20, False
    return 8 << 20, 48 << 20, False       # unknown chip: conservative


def _anomaly_kernel(x_ref, w_ref, b_ref, out_ref, acc_ref, *,
                    total_f, rchunk, mask_tail):
    # x_ref:   (tb, tf) VMEM, input dtype (bf16/f32) - upcast streamed below
    # w_ref:   (1, tf)  VMEM, f32 weight, pre-tiled over S and pre-scaled by 1/S
    # b_ref:   (1,)     SMEM, scalar bias
    # out_ref: (1,1,tb) VMEM, lane-dense output block (batch on the lane axis)
    # acc_ref: (tb, 1)  VMEM scratch, f32 per-row partial sums (lives across j)
    j = pl.program_id(1)

    @pl.when(j == 0)
    def _init():
        acc_ref[...] = jnp.zeros_like(acc_ref)

    tb, tf = x_ref.shape
    w = w_ref[...]                                              # (1, tf) f32

    if mask_tail:  # static: only when the last feature block extends past F
        cols = j * tf + jax.lax.broadcasted_iota(jnp.int32, (1, tf), 1)
        colmask = cols < total_f

    def row_contrib(r, nrows):
        # Bounded f32 slab: only (nrows, tf) is ever live in f32.
        xs = x_ref[pl.ds(r, nrows), :].astype(jnp.float32)
        p = xs * w                                              # VPU
        if mask_tail:
            p = jnp.where(colmask, p, 0.0)                      # kill OOB columns
        return jnp.sum(p, axis=-1, keepdims=True)               # (nrows, 1), XLU

    n_full = tb // rchunk
    rem = tb - n_full * rchunk

    @pl.loop(0, n_full, unroll=n_full <= 8)
    def _rows(c):
        r = pl.multiple_of(c * rchunk, rchunk)
        acc_ref[pl.ds(r, rchunk), :] += row_contrib(r, rchunk)

    if rem:                                                     # static tail
        r0 = n_full * rchunk
        acc_ref[pl.ds(r0, rem), :] += row_contrib(r0, rem)

    @pl.when(j == pl.num_programs(1) - 1)
    def _finalize():
        logits = jnp.sum(acc_ref[...], axis=-1) + b_ref[0]      # (tb,)
        out_ref[0, 0, :] = jax.nn.sigmoid(logits)               # lane-dense store


def anomaly_scores_pallas(x_bf, w_bf, bias_1, *, tile_bytes=None, vmem_limit=None,
                          feat_cap=_FEAT_CAP, slab_bytes=_SLAB_BYTES):
    """x_bf: (B, F) f32/bf16; w_bf: (1, F) f32 (pre-scaled); bias_1: (1,) f32.

    Returns sigmoid(x_bf @ w_bf.T + bias) as (B, 1) f32.
    """
    B, F = x_bf.shape
    assert w_bf.shape == (1, F)
    itemsize = jnp.dtype(x_bf.dtype).itemsize

    auto_tile, auto_vmem, want_two = _device_budgets()
    tile_bytes = auto_tile if tile_bytes is None else tile_bytes
    vmem_limit = auto_vmem if vmem_limit is None else vmem_limit

    # Feature (lane) axis: whole F when modest, else feat_cap-lane chunks on an
    # "arbitrary" reduction grid axis (bounds each block independently of S*D).
    tf = F if F <= feat_cap else feat_cap
    nf = pl.cdiv(F, tf)
    mask_tail = (F % tf) != 0

    # Batch (sublane) axis: biggest tile within the budget; multiple of 128 when
    # possible, else 8. Partial edge blocks are handled by Pallas (no jnp.pad).
    rows = tile_bytes // max(1, tf * itemsize)
    if rows >= B:
        tb = B
    elif rows >= 128:
        tb = _round_down(rows, 128)
    else:
        tb = max(8, _round_down(rows, 8))
    # v7x: keep >= 2 batch tiles so the "parallel" axis shards across both cores.
    if want_two and B > 8 and pl.cdiv(B, tb) < 2:
        tb = max(8, _round_up(pl.cdiv(B, 2), 8))
    gb = pl.cdiv(B, tb)

    # In-kernel streaming row-chunk: bounds the live f32 upcast slab.
    rchunk = min(tb, max(8, _round_down(slab_bytes // (tf * 4), 8)))

    kernel = functools.partial(_anomaly_kernel, total_f=F, rchunk=rchunk,
                               mask_tail=mask_tail)

    out = pl.pallas_call(
        kernel,
        out_shape=jax.ShapeDtypeStruct((gb, 1, tb), jnp.float32),
        grid=(gb, nf),
        in_specs=[
            # x: double-buffered DMA pipeline over (batch, feature) blocks.
            # TODO(synk): on v7x with spare VMEM headroom, pipeline_mode=
            # pl.Buffered(3) here would hide grid-step boundary gaps at 3.2 TB/s.
            pl.BlockSpec((tb, tf), lambda i, j: (i, j)),
            pl.BlockSpec((1, tf), lambda i, j: (0, j)),           # weight chunk
            pl.BlockSpec(memory_space=pltpu.MemorySpace.SMEM),    # scalar bias
        ],
        out_specs=pl.BlockSpec((1, 1, tb), lambda i, j: (i, 0, 0)),
        scratch_shapes=[pltpu.VMEM((tb, 1), jnp.float32)],
        compiler_params=pltpu.CompilerParams(
            dimension_semantics=("parallel", "arbitrary"),
            vmem_limit_bytes=vmem_limit,
        ),
        cost_estimate=pl.CostEstimate(
            flops=2 * B * F,
            transcendentals=B,
            bytes_accessed=B * F * itemsize + F * 4 + B * 4,
        ),
    )(x_bf, w_bf, bias_1)

    return out.reshape(gb * tb)[:B].reshape(B, 1)


def anomaly_detector_forward(x, weight, bias, rng_key):
    """Mirrors AnomalyDetector.forward.

    x: (D,), (B, D) or (B, S, D) float32/bfloat16
    weight: (1, D) (PyTorch nn.Linear layout), bias: (1,)
    Returns {'combined_scores': (B, 1) f32, 'anomalies_detected': (B,) int32}
    """
    input_dim = weight.shape[1]

    if x.ndim == 1:
        x = x[None, :]                        # (1, D)
    if x.ndim == 2:
        seq = 1
        x_flat = x                            # (B, D)
    elif x.ndim == 3:
        seq = x.shape[1]
        x_flat = x.reshape(x.shape[0], -1)    # (B, S*D): free, contiguous reshape
    else:
        raise ValueError("unsupported rank")

    if x.shape[-1] != input_dim:
        print(f"AnomalyDetector: Input dim {x.shape[-1]} does not match "
              f"expected {input_dim}. Trying to proceed.")

    w32 = weight.reshape(1, -1).astype(jnp.float32)
    if seq > 1:
        # Flattened weight: repeat over S and fold the 1/S mean scale in, so the
        # kernel sees one lane-dense (1, S*D) vector and does a single reduction.
        w_flat = jnp.tile(w32, (1, seq)) * (1.0 / seq)
    else:
        w_flat = w32
    b_1 = bias.reshape(1).astype(jnp.float32)

    # x stays in its HBM dtype (bf16 halves the dominant DMA bytes); the kernel
    # upcasts to f32 chunk-by-chunk in VMEM.
    scores = anomaly_scores_pallas(x_flat, w_flat, b_1)

    # torch.rand(...) > 0.8 - nondeterministic in the reference; reproduced with
    # the provided JAX key (pure glue, not a kernel hot path).
    B = x_flat.shape[0]
    anomalies = (jax.random.uniform(rng_key, (B,)) > 0.8).astype(jnp.int32)

    return {"combined_scores": scores, "anomalies_detected": anomalies}


if __name__ == "__main__":
    key = jax.random.PRNGKey(0)
    k_x, k_w, k_b, k_rand = jax.random.split(key, 4)

    B, S, D = 2, 8, 32          # batch=2, seq=8, hidden(input_dim)=32
    x = jax.random.normal(k_x, (B, S, D), dtype=jnp.float32)

    # Deterministic nn.Linear(input_dim, 1)-shaped parameters.
    bound = 1.0 / (D ** 0.5)
    weight = jax.random.uniform(k_w, (1, D), minval=-bound, maxval=bound,
                                dtype=jnp.float32)
    bias = jax.random.uniform(k_b, (1,), minval=-bound, maxval=bound,
                              dtype=jnp.float32)

    out = anomaly_detector_forward(x, weight, bias, k_rand)
    jax.block_until_ready(out["combined_scores"])
    jax.block_until_ready(out["anomalies_detected"])

    # Reference check (3-D branch, f32).
    ref = jax.nn.sigmoid(jnp.mean(x, axis=1) @ weight.T + bias)
    assert jnp.allclose(out["combined_scores"], ref, atol=1e-5), "mismatch (3D f32)"
    assert out["combined_scores"].shape == (B, 1)
    assert out["anomalies_detected"].shape == (B,)
    assert out["anomalies_detected"].dtype == jnp.int32

    # 2-D branch (no seq axis) - matches nn.Linear on (B, D) directly.
    x2 = jax.random.normal(k_b, (3, D), dtype=jnp.float32)
    out2 = anomaly_detector_forward(x2, weight, bias, k_rand)
    ref2 = jax.nn.sigmoid(x2 @ weight.T + bias)
    assert jnp.allclose(out2["combined_scores"], ref2, atol=1e-5), "mismatch (2D)"

    # bf16 input stays bf16 in HBM (half the DMA bytes); kernel upcasts in VMEM.
    xb = x.astype(jnp.bfloat16)
    outb = anomaly_detector_forward(xb, weight, bias, k_rand)
    refb = jax.nn.sigmoid(jnp.mean(xb.astype(jnp.float32), axis=1) @ weight.T + bias)
    assert jnp.allclose(outb["combined_scores"], refb, atol=1e-4), "mismatch (bf16)"

    # Multi-batch-tile path with a partial edge block (no wrapper jnp.pad).
    Bm = 20
    xm = jax.random.normal(k_w, (Bm, S, D), dtype=jnp.float32)
    wm = jnp.tile(weight.astype(jnp.float32), (1, S)) * (1.0 / S)
    bm = bias.reshape(1).astype(jnp.float32)
    refm = jax.nn.sigmoid(jnp.mean(xm, axis=1) @ weight.T + bias)

    sm_tiles = anomaly_scores_pallas(xm.reshape(Bm, S * D), wm, bm,
                                     tile_bytes=8 * S * D * 4)   # 3 batch tiles, edge block
    assert jnp.allclose(sm_tiles, refm, atol=1e-5), "mismatch (batch-tiled edge block)"

    # In-kernel row-chunk streaming (loop + static remainder) path.
    sm_rows = anomaly_scores_pallas(xm.reshape(Bm, S * D), wm, bm,
                                    slab_bytes=8 * S * D * 4)    # rchunk=8 < tb
    assert jnp.allclose(sm_rows, refm, atol=1e-5), "mismatch (row-chunk streaming)"

    # Feature-reduction grid axis ("arbitrary") with masked tail block: F=400
    # split into 128-lane chunks (400 % 128 != 0 exercises the OOB-column mask).
    Df, Sf = 80, 5
    xf = jax.random.normal(k_x, (4, Sf, Df), dtype=jnp.float32)
    wf_row = jax.random.uniform(k_w, (1, Df), minval=-0.1, maxval=0.1,
                                dtype=jnp.float32)
    wf = jnp.tile(wf_row, (1, Sf)) * (1.0 / Sf)
    sf = anomaly_scores_pallas(xf.reshape(4, Sf * Df), wf, bm, feat_cap=128)
    reff = jax.nn.sigmoid(jnp.mean(xf, axis=1) @ wf_row.T + bias)
    assert jnp.allclose(sf, reff, atol=1e-5), "mismatch (feature-split + tail mask)"

    print("KERNEL_OK")
</pallas_src>

<mosaic_0001>
module attributes {stable_mosaic.version = 11 : i64} {
  func.func @_anomaly_kernel(%arg0: i32, %arg1: i32, %arg2: memref<2x256xf32, #tpu.memory_space<vmem>>, %arg3: memref<1x256xf32, #tpu.memory_space<vmem>>, %arg4: memref<1xf32, #tpu.memory_space<smem>>, %arg5: memref<1x1x2xf32, #tpu.memory_space<vmem>>, %arg6: memref<2x1xf32, #tpu.memory_space<vmem>>) attributes {dimension_semantics = [#tpu.dimension_semantics<parallel>, #tpu.dimension_semantics<arbitrary>], iteration_bounds = array<i64: 1, 1>, scalar_prefetch = 0 : i64, scratch_operands = 1 : i64, tpu.core_type = #tpu.core_type<tc>, window_params = [{transform_indices = @transform_0, window_bounds = array<i64: 2, 256>}, {transform_indices = @transform_1, window_bounds = array<i64: 1, 256>}, {transform_indices = @transform_2, window_bounds = array<i64: 1>}, {transform_indices = @transform_3, window_bounds = array<i64: 1, 1, 2>}]} {
    %c0_i32 = arith.constant 0 : i32
    %0 = arith.cmpi eq, %arg1, %c0_i32 : i32
    %1 = arith.extui %0 : i1 to i32
    %c0_i32_0 = arith.constant 0 : i32
    %2 = arith.cmpi ne, %1, %c0_i32_0 : i32
    scf.if %2 {
      %cst_10 = arith.constant 0.000000e+00 : f32
      %22 = vector.broadcast %cst_10 : f32 to vector<2x1xf32>
      %c0_11 = arith.constant 0 : index
      %c0_12 = arith.constant 0 : index
      %23 = vector.load %arg6[%c0_11, %c0_12] : memref<2x1xf32, #tpu.memory_space<vmem>>, vector<2x1xf32>
      tpu.vector_store %arg6[%c0_11, %c0_12], %22 {strides = array<i32>} : memref<2x1xf32, #tpu.memory_space<vmem>>, vector<2x1xf32>,
    } else {
    }
    %c0 = arith.constant 0 : index
    %c0_1 = arith.constant 0 : index
    %3 = vector.load %arg3[%c0, %c0_1] : memref<1x256xf32, #tpu.memory_space<vmem>>, vector<1x256xf32>
    %c0_i32_2 = arith.constant 0 : i32
    %c1_i32 = arith.constant 1 : i32
    %4 = arith.muli %c0_i32_2, %c1_i32 : i32
    %c0_i32_3 = arith.constant 0 : i32
    %5 = arith.addi %c0_i32_3, %4 : i32
    %c2_i32 = arith.constant 2 : i32
    %6 = arith.muli %5, %c2_i32 : i32
    %7 = tpu.assume_multiple %6, 2 : i32
    %8 = arith.index_cast %7 : i32 to index
    %c0_4 = arith.constant 0 : index
    %9 = vector.load %arg6[%8, %c0_4] : memref<2x1xf32, #tpu.memory_space<vmem>>, vector<2x1xf32>
    %10 = arith.index_cast %7 : i32 to index
    %c0_5 = arith.constant 0 : index
    %11 = vector.load %arg2[%10, %c0_5] : memref<2x256xf32, #tpu.memory_space<vmem>>, vector<2x256xf32>
    %12 = vector.broadcast %3 : vector<1x256xf32> to vector<2x256xf32>
    %13 = arith.mulf %11, %12 : vector<2x256xf32>
    %cst = arith.constant dense<0.000000e+00> : vector<2xf32>
    %14 = vector.multi_reduction <add>, %13, %cst [1] : vector<2x256xf32> to vector<2xf32>
    %15 = vector.shape_cast %14 : vector<2xf32> to vector<2x1xf32>
    %16 = arith.addf %9, %15 : vector<2x1xf32>
    %17 = arith.index_cast %7 : i32 to index
    %c0_6 = arith.constant 0 : index
    %18 = vector.load %arg6[%17, %c0_6] : memref<2x1xf32, #tpu.memory_space<vmem>>, vector<2x1xf32>
    tpu.vector_store %arg6[%17, %c0_6], %16 {strides = array<i32>} : memref<2x1xf32, #tpu.memory_space<vmem>>, vector<2x1xf32>,
    %c1_i32_7 = arith.constant 1 : i32
    %c0_i32_8 = arith.constant 0 : i32
    %19 = arith.cmpi eq, %arg1, %c0_i32_8 : i32
    %20 = arith.extui %19 : i1 to i32
    %c0_i32_9 = arith.constant 0 : i32
    %21 = arith.cmpi ne, %20, %c0_i32_9 : i32
    scf.if %21 {
      %c0_10 = arith.constant 0 : index
      %c0_11 = arith.constant 0 : index
      %22 = vector.load %arg6[%c0_10, %c0_11] : memref<2x1xf32, #tpu.memory_space<vmem>>, vector<2x1xf32>
      %cst_12 = arith.constant dense<0.000000e+00> : vector<2xf32>
      %23 = vector.multi_reduction <add>, %22, %cst_12 [1] : vector<2x1xf32> to vector<2xf32>
      %c0_13 = arith.constant 0 : index
      %24 = memref.load %arg4[%c0_13] : memref<1xf32, #tpu.memory_space<smem>>
      %25 = vector.broadcast %24 : f32 to vector<2xf32>
      %26 = arith.addf %23, %25 : vector<2xf32>
      %27 = arith.negf %26 : vector<2xf32>
      %28 = math.exp %27 : vector<2xf32>
      %cst_14 = arith.constant 1.000000e+00 : f32
      %29 = vector.broadcast %cst_14 : f32 to vector<2xf32>
      %30 = arith.addf %29, %28 : vector<2xf32>
      %31 = arith.divf %29, %30 : vector<2xf32>
      %c0_15 = arith.constant 0 : index
      %c0_16 = arith.constant 0 : index
      %c0_17 = arith.constant 0 : index
      %32 = vector.load %arg5[%c0_15, %c0_16, %c0_17] : memref<1x1x2xf32, #tpu.memory_space<vmem>>, vector<1x1x2xf32>
      %33 = vector.shape_cast %32 : vector<1x1x2xf32> to vector<2xf32>
      %34 = vector.shape_cast %31 : vector<2xf32> to vector<1x1x2xf32>
      tpu.vector_store %arg5[%c0_15, %c0_16, %c0_17], %34 {strides = array<i32>} : memref<1x1x2xf32, #tpu.memory_space<vmem>>, vector<1x1x2xf32>,
    } else {
    }
    return
  }
  func.func @transform_0(%arg0: i32, %arg1: i32) -> (i32, i32) {
    %c0_i32 = arith.constant 0 : i32
    return %arg0, %arg1 : i32, i32
  }
  func.func @transform_1(%arg0: i32, %arg1: i32) -> (i32, i32) {
    %c0_i32 = arith.constant 0 : i32
    %c0_i32_0 = arith.constant 0 : i32
    return %c0_i32, %arg1 : i32, i32
  }
  func.func @transform_2(%arg0: i32, %arg1: i32) -> i32 {
    %c0_i32 = arith.constant 0 : i32
    %c0_i32_0 = arith.constant 0 : i32
    return %c0_i32 : i32
  }
  func.func @transform_3(%arg0: i32, %arg1: i32) -> (i32, i32, i32) {
    %c0_i32 = arith.constant 0 : i32
    %c0_i32_0 = arith.constant 0 : i32
    %c0_i32_1 = arith.constant 0 : i32
    return %arg0, %c0_i32, %c0_i32_0 : i32, i32, i32
  }
}

</mosaic_0001>

<llo_original>
// kernel: tpu_custom_call.1
$region0: #{tpu_custom_call.1}
  #allocation0 [shape = 'u32[]', space=smem, size = 0x4, offset = 0x4, fixed_abs, tag = 'smem constant byte address 0x4 - core index']
  #allocation1 [shape = 'u32[144,128]{1,0:T(1,128)}', space=vmem, size = 0x12000, scoped, tag = 'internal scratch']
  #allocation2 [shape = 'f32[2,1]{1,0:T(2,128)}', space=vmem, size = 0x400, scoped, tag = 'scratch operand']
  #allocation3 [shape = 'f32[1]{0:T(128)S(6)}', space=smem, size = 0x200, scoped, tag = 'scoped memory for tpu_custom_call.1']
  %s0 = inlined_call_operand.hbm [shape: f32[2,256], index: 0, kind: input, shape index: {}]
  %s1 = inlined_call_operand.vmem [shape: f32[1,256], index: 1, kind: input, shape index: {}]
  %s2 = inlined_call_operand.<no memory space> [shape: f32[1], index: 2, kind: input, shape index: {}]
  %s3 = inlined_call_operand.hbm [shape: f32[1,1,2], index: 3, kind: output, shape index: {}]
  %s4 = sld [smem:[#allocation0]]
  $region34: #{tpu_custom_call.1} parent=0
    _
  %s6 = ssub.s32 1, %s4
  %s7 = scalar_select 0, %s6, %s4
  %8 = sst [smem:[#allocation3]] %s2
  $region1: #{tpu_custom_call.1} parent=0
    #allocation4 [shape = 'u8[2048]{0}', space=vmem, size = 0x800, scoped, tag = 'input window, operand 0, single buffered']
    #allocation5 [shape = 's32[1]{0}', space=sflag, size = 0x4, scoped, tag = 'scoped memory for tpu_custom_call.1']
    #allocation6 [shape = 's32[1]{0}', space=sflag, size = 0x4, scoped, tag = 'scoped memory for tpu_custom_call.1']
    #allocation7 [shape = 'u8[512]{0}', space=vmem, size = 0x400, scoped, tag = 'output window, operand 0, single buffered']
    %9 = vsyncpa [#allocation5], 0
    %10 = vsyncpa [#allocation6], 0
    // Predicated region
    $region2: #{tpu_custom_call.1} parent=1 // pred_check
      _
    $region3: #{tpu_custom_call.1} parent=1 // pred_check_branch
      %12 = sbr.rel (0) target = $region5
    $region4: #{tpu_custom_call.1} parent=1 // pred_region
      %s14 = ssub.s32 64, 64
      %15 = vsyncadd [#allocation5], %s14
      %s17 = sshll.u32 [#allocation4], 4
      %s18 = int_to_ptr.vmem [resolvable:$true] %s17
      %20 = dma.hbm_to_vmem [thread:$0]  %s0, 64, %s18, [#allocation5]
    $region5: #{tpu_custom_call.1} parent=1 // pred_fallthru
      _
    // Predicated region
    $region6: #{tpu_custom_call.1} parent=1 // pred_check
      _
    $region7: #{tpu_custom_call.1} parent=1 // pred_check_branch
      %22 = sbr.rel (0) target = $region9
    $region8: #{tpu_custom_call.1} parent=1 // pred_region
      _
    $region9: #{tpu_custom_call.1} parent=1 // pred_fallthru
      _
    // Predicated region
    $region10: #{tpu_custom_call.1} parent=1 // pred_check
      _
    $region11: #{tpu_custom_call.1} parent=1 // pred_check_branch
      %24 = sbr.rel (0) target = $region13
    $region12: #{tpu_custom_call.1} parent=1 // pred_region
      _
    $region13: #{tpu_custom_call.1} parent=1 // pred_fallthru
      _
    // Predicated region
    $region14: #{tpu_custom_call.1} parent=1 // pred_check
      _
    $region15: #{tpu_custom_call.1} parent=1 // pred_check_branch
      %26 = sbr.rel (0) target = $region17
    $region16: #{tpu_custom_call.1} parent=1 // pred_region
      %27 = dma.done [#allocation5], 64
    $region17: #{tpu_custom_call.1} parent=1 // pred_fallthru
      _
    %p28 = scmp.eq.s32.totalorder 0, 0
    // Predicated region
    $region18: #{tpu_custom_call.1} parent=1 // pred_check
      %p29 = pneg %p28
    $region19: #{tpu_custom_call.1} parent=1 // pred_check_branch
      %31 = sbr.rel (%p29) target = $region21
    $region20: #{tpu_custom_call.1} parent=1 // pred_region
      %vm32 = vcmask 1024
      %33 = vst.msk [vmem:[#allocation2] sm:$0x3] %vm32, 0.0
    $region21: #{tpu_custom_call.1} parent=1 // pred_fallthru
      _
    %v34 = vld [vmem:[%s1] sm:$0x3]
    %v35 = vld [vmem:[#allocation2] sm:$0x3]
    %s36 = smul.u32 0, 2
    %s37 = smul.addr %s36, 2
    %s38 = scalar_lea.vmem [#allocation4], %s37
    %v39 = vld [vmem:[%s38] sm:$0xf]
    %v41 = vlaneseq
    %v42 = vshrl.u32 %v41, 7
    %v43 = vsub.s32 0, %v42
    %v44 = vrot.slane %v34, %v43
    %v45 = vlaneseq
    %v46 = vshrl.u32 %v45, 7
    %v47 = vsub.s32 1, %v46
    %v48 = vrot.slane %v34, %v47
    %v49 = vcombine.low %v44, %v48
    %v51 = vunpack.c.l.s4 1983009808
    %v52 = vunpack.c.0.s8 %v51
    %v53 = vlaneseq
    %v54 = vshrl.u32 %v53, 7
    %v55 = vsub.s32 %v52, %v54
    %v56 = vrot.slane %v49, %v55
    %v58 = vmul.f32 %v39, %v56
    %v61 = vunpack.c.l.s4 1983009808
    %v62 = vunpack.c.0.s8 %v61
    %v63 = vlaneseq
    %v64 = vshrl.u32 %v63, 7
    %v65 = vsub.s32 %v62, %v64
    %v66 = vrot.slane %v58, %v65
    %v67 = vcombine.high %v66, %v66
    %vm70 = vcmask 1041408
    %v71 = vsel %vm70, %v66, 0.0
    %v72 = vsel %vm70, %v67, 0.0
    %v73 = vadd.f32 %v71, %v72
    %74 = vadd.xlane.f32.xlu0 %v73
    %v75 = vpop.xlane.xlu0 %74
    %v76 = vadd.f32 %v35, %v75
    %vm77 = vcmask 1024
    %78 = vst.msk [vmem:[#allocation2] sm:$0x3] %vm77, %v76
    // Predicated region
    $region22: #{tpu_custom_call.1} parent=1 // pred_check
      %p79 = pneg %p28
    $region23: #{tpu_custom_call.1} parent=1 // pred_check_branch
      %81 = sbr.rel (%p79) target = $region25
    $region24: #{tpu_custom_call.1} parent=1 // pred_region
      %v82 = vld [vmem:[#allocation2] sm:$0x3]
      %v83 = vadd.f32 %v82, 0.0
      %s84 = sld [smem:[#allocation3]]
      %v85 = vstv %s84
      %v86 = vadd.f32 %v83, %v85
      %v87 = vxor.u32 %v86, 2147483648
      %v88 = vmul.f32 %v87, 1.442695
      %v89 = vpow.pop %v88
      %v90 = vadd.f32 %v89, 1.0
      %v91 = vrcp.pop %v90
      %v92 = vmul.f32 1.0, %v91
      %94 = vset.pattern.permute.xlu0 0
      %95 = vperm.xlu0 %94, %v92
      %v96 = vpop.permute.xlu0 %95
      %v97 = vlaneseq
      %v98 = vand.u32 %v97, 127
      %v99 = vlaneseq
      %v100 = vshrl.u32 %v99, 7
      %v101 = vsub.s32 %v98, %v100
      %v102 = vrot.slane %v96, %v101
      %vm104 = vcmask 8192
      %105 = vst.msk [vmem:[#allocation7] sm:$0x1] %vm104, %v102
    $region25: #{tpu_custom_call.1} parent=1 // pred_fallthru
      _
    // Predicated region
    $region26: #{tpu_custom_call.1} parent=1 // pred_check
      _
    $region27: #{tpu_custom_call.1} parent=1 // pred_check_branch
      %107 = sbr.rel (0) target = $region29
    $region28: #{tpu_custom_call.1} parent=1 // pred_region
      %s109 = ssub.s32 16, 16
      %110 = vsyncadd [#allocation6], %s109
      %s112 = sshll.u32 [#allocation7], 4
      %s113 = int_to_ptr.vmem [resolvable:$true] %s112
      %115 = dma.vmem_to_hbm [thread:$0]  %s113, 16, %s3, [#allocation6]
    $region29: #{tpu_custom_call.1} parent=1 // pred_fallthru
      _
    // Predicated region
    $region30: #{tpu_custom_call.1} parent=1 // pred_check
      _
    $region31: #{tpu_custom_call.1} parent=1 // pred_check_branch
      %117 = sbr.rel (0) target = $region33
    $region32: #{tpu_custom_call.1} parent=1 // pred_region
      %118 = dma.done [#allocation6], 16
    $region33: #{tpu_custom_call.1} parent=1 // pred_fallthru
      _
    %119 = vsyncpa [#allocation5], 1
    %120 = vsyncpa [#allocation6], 1

</llo_original>
